<compile_context>
chip_gen: v5e
topology: v5e:2x2
jax: 0.10.0
libtpu: 0.0.40
codegen_flags: <defaults>
</compile_context>

<pallas_src>
import functools

import jax
import jax.numpy as jnp
from jax.experimental import pallas as pl
from jax.experimental.pallas import tpu as pltpu

EPS = 1e-5


def _round_up(a, b):
    return ((a + b - 1) // b) * b


def _pow2_mul_128(x):
    """Largest power-of-two multiple of 128 that is <= max(x, 128)."""
    m = max(int(x) // 128, 1)
    return 128 * (1 << (m.bit_length() - 1))


def _vmem_budget_bytes():
    """~75% of this chip's VMEM (=> ~48 MiB on v7x, ~96 MiB on v5e/v6e)."""
    try:
        cap = int(pltpu.get_tpu_info().vmem_capacity_bytes)
    except Exception:
        cap = 64 << 20                      # conservative: v7x physical VMEM
    return max((cap * 3) // 4, 32 << 20)


def _pass1_vmem_bytes(C, s_tile, itemsize):
    return (2 * C * s_tile * itemsize       # double-buffered x tile
            + 2 * 2 * C * 128 * 4           # (2, C, 128) accumulator block
            + 3 * C * s_tile * 4)           # f32 cast + mask + squares temps


def _pass2_vmem_bytes(C, L, s_tile, itemsize):
    return (2 * C * s_tile * itemsize       # x tile (double buffered)
            + 2 * C * s_tile * itemsize     # out tile (double buffered)
            + 2 * s_tile * 4                # idx tile
            + 2 * 2 * C * L * 4             # gamma'/beta' tables
            + C * s_tile * 4                # x -> f32 cast
            + 2 * L * s_tile * 4            # label iota + one-hot
            + 2 * C * s_tile * 4            # per-pixel gamma/beta (MXU out)
            + C * s_tile * 4)               # fused f32 result before cast


# ---------------------------------------------------------------------------
# Pass 1: per-(split, batch, channel) partial sums of x and x^2.
#   grid = (n_splits, B, tiles_per_split); first two axes "parallel",
#   spatial axis "arbitrary" (accumulator).  Output: (n_splits*B, 2, C, 128)
#   f32 lane-dense partials, combined across splits/batch/lanes in JAX glue.
# ---------------------------------------------------------------------------
def _stats_kernel(x_ref, sums_ref, *, s_tile, spatial, tiles_per_split):
    split = pl.program_id(0)
    s = pl.program_id(2)

    @pl.when(s == 0)
    def _():
        sums_ref[...] = jnp.zeros_like(sums_ref)

    # Virtual tile index.  The index_map clamps the actual HBM read so it
    # never goes out of bounds; tiles whose virtual range starts at/after
    # `spatial` are fully masked out below (every lane position >= spatial),
    # which also covers duplicated clamped reads of the last real tile.
    t = split * tiles_per_split + s
    lane = jax.lax.broadcasted_iota(jnp.int32, (1, s_tile), 1)
    valid = (t * s_tile + lane) < spatial

    x = jnp.where(valid, x_ref[0].astype(jnp.float32), 0.0)   # (C, s_tile)
    s1 = x
    s2 = x * x
    w = s_tile
    while w > 128:               # lane-group fold: vreg-aligned slices + VPU adds
        w //= 2
        s1 = s1[:, :w] + s1[:, w:]
        s2 = s2[:, :w] + s2[:, w:]
    sums_ref[0, 0] += s1         # (C, 128)
    sums_ref[0, 1] += s2


# ---------------------------------------------------------------------------
# Pass 2: out = gamma'[idx] * x + beta'[idx]
#   gamma_ref / beta_ref: (C, L) tables with BatchNorm folded in.
#   Two one-hot MXU matmuls (no sublane-crossing slices).
# ---------------------------------------------------------------------------
def _modulate_kernel(x_ref, idx_ref, gamma_ref, beta_ref, out_ref):
    x = x_ref[0].astype(jnp.float32)                      # (C, s_tile)
    idx = idx_ref[0]                                      # (1, s_tile) int32
    L = gamma_ref.shape[1]
    s_tile = x.shape[1]

    lbl = jax.lax.broadcasted_iota(jnp.int32, (L, s_tile), 0)
    onehot = (lbl == idx).astype(jnp.float32)             # (L, s_tile)

    g = jnp.dot(gamma_ref[...], onehot, preferred_element_type=jnp.float32)
    b = jnp.dot(beta_ref[...], onehot, preferred_element_type=jnp.float32)
    out_ref[0] = (g * x + b).astype(out_ref.dtype)


# ---------------------------------------------------------------------------
# Wrapper
# ---------------------------------------------------------------------------
def clade_modulation(x, segmentation_map, weight, bias, *,
                     target_tile_bytes=4 << 20):
    """x: (B, C, H, W) NCHW.  segmentation_map: (B, L, Hs, Ws) NCHW.
    weight/bias: (L, C).  Returns (B, C, H, W)."""
    B, C, H, W = x.shape
    L = segmentation_map.shape[1]
    Hs, Ws = segmentation_map.shape[2], segmentation_map.shape[3]
    S = H * W
    itemsize = jnp.dtype(x.dtype).itemsize

    # Glue: argmax at native segmentation resolution, then nearest-neighbour
    # resize of the (cheap) index map (F.interpolate 'nearest' uses
    # src = floor(dst * in / out)); argmax commutes with nearest resize.
    idx_nat = jnp.argmax(segmentation_map, axis=1).astype(jnp.int32)  # (B,Hs,Ws)
    hi = (jnp.arange(H) * Hs) // H
    wi = (jnp.arange(W) * Ws) // W
    idx = idx_nat[:, hi, :][:, :, wi]                                 # (B, H, W)

    # NCHW-native: flatten spatial dims only (contiguous -> free). No padding.
    x3 = x.reshape(B, C, S)
    idx3 = idx.reshape(B, 1, S)

    # Tile sizing: lane-dense power-of-two tiles, ~target_tile_bytes of x per
    # step, shrunk until both passes' per-step VMEM footprints fit the budget.
    budget = _vmem_budget_bytes()
    s_cap = _pow2_mul_128(_round_up(S, 128))
    s_tile = min(
        _pow2_mul_128(max(target_tile_bytes // max(C * itemsize, 1), 128)),
        s_cap)
    while s_tile > 128 and max(_pass1_vmem_bytes(C, s_tile, itemsize),
                               _pass2_vmem_bytes(C, L, s_tile, itemsize)) > budget:
        s_tile //= 2

    nt = pl.cdiv(S, s_tile)

    # --- pass 1: per-(split, batch) partial (sum, sum_sq) per channel ---
    # With B == 1 a single 'parallel' batch axis would idle the second v7x
    # TensorCore, so split the spatial reduction range across a leading
    # parallel axis (negligible cost elsewhere: one tiny extra partial).
    n_splits = 2 if (B == 1 and nt >= 2) else 1
    nt_ps = pl.cdiv(nt, n_splits)
    if n_splits == 1:
        x_map1 = lambda c, b, s: (b, 0, s)
    else:
        x_map1 = lambda c, b, s: (b, 0, jnp.minimum(c * nt_ps + s, nt - 1))

    sums = pl.pallas_call(
        functools.partial(_stats_kernel, s_tile=s_tile, spatial=S,
                          tiles_per_split=nt_ps),
        out_shape=jax.ShapeDtypeStruct((n_splits * B, 2, C, 128), jnp.float32),
        grid_spec=pltpu.PrefetchScalarGridSpec(
            num_scalar_prefetch=0,
            grid=(n_splits, B, nt_ps),
            in_specs=[pl.BlockSpec((1, C, s_tile), x_map1)],
            out_specs=pl.BlockSpec((1, 2, C, 128),
                                   lambda c, b, s: (c * B + b, 0, 0, 0))),
        compiler_params=pltpu.CompilerParams(
            dimension_semantics=("parallel", "parallel", "arbitrary"),
            vmem_limit_bytes=budget),
    )(x3)

    # --- glue: finish BN stats and fold them into the class-affine tables ---
    tot = jnp.sum(sums, axis=(0, 3))                     # (2, C)
    n = jnp.float32(B * S)
    mean = tot[0] / n
    var = jnp.maximum(tot[1] / n - mean * mean, 0.0)     # biased variance
    inv_std = jax.lax.rsqrt(var + EPS)
    w32 = weight.astype(jnp.float32)
    b32 = bias.astype(jnp.float32)
    gamma_t = (w32 * inv_std[None, :]).T                 # (C, L)
    beta_t = (b32 - w32 * (mean * inv_std)[None, :]).T   # (C, L)

    # --- pass 2: normalize + class-affine modulation (fused) ---
    # Ragged last spatial tile needs no handling: out-of-bounds output writes
    # on partial edge blocks are discarded, and garbage idx/x lanes only
    # affect those discarded lanes.
    out3 = pl.pallas_call(
        _modulate_kernel,
        out_shape=jax.ShapeDtypeStruct((B, C, S), x.dtype),
        grid_spec=pltpu.PrefetchScalarGridSpec(
            num_scalar_prefetch=0,
            grid=(B, nt),
            in_specs=[pl.BlockSpec((1, C, s_tile), lambda b, s: (b, 0, s)),
                      pl.BlockSpec((1, 1, s_tile), lambda b, s: (b, 0, s)),
                      pl.BlockSpec((C, L), lambda b, s: (0, 0)),
                      pl.BlockSpec((C, L), lambda b, s: (0, 0))],
            out_specs=pl.BlockSpec((1, C, s_tile), lambda b, s: (b, 0, s))),
        compiler_params=pltpu.CompilerParams(
            dimension_semantics=("parallel", "parallel"),
            vmem_limit_bytes=budget),
    )(x3, idx3, gamma_t, beta_t)

    return out3.reshape(B, C, H, W)


# ---------------------------------------------------------------------------
# Pure-JAX reference (for correctness check)
# ---------------------------------------------------------------------------
def clade_modulation_ref(x, segmentation_map, weight, bias):
    B, C, H, W = x.shape
    Hs, Ws = segmentation_map.shape[2], segmentation_map.shape[3]
    mean = jnp.mean(x, axis=(0, 2, 3), keepdims=True)
    var = jnp.mean((x - mean) ** 2, axis=(0, 2, 3), keepdims=True)
    x_norm = (x - mean) / jnp.sqrt(var + EPS)
    hi = (jnp.arange(H) * Hs) // H
    wi = (jnp.arange(W) * Ws) // W
    seg_r = segmentation_map[:, :, hi, :][:, :, :, wi]
    idx = jnp.argmax(seg_r, axis=1)                      # (B, H, W)
    gamma = jnp.transpose(weight[idx], (0, 3, 1, 2))     # (B, C, H, W)
    beta = jnp.transpose(bias[idx], (0, 3, 1, 2))
    return gamma * x_norm + beta


if __name__ == "__main__":
    key = jax.random.PRNGKey(0)
    kx, ks, kw = jax.random.split(key, 3)

    B, C, H, W = 2, 32, 16, 16      # batch, feature_map_dim, spatial
    L = 8                           # num_labels
    Hs = Ws = 32                    # segmentation map native size

    x = jax.random.normal(kx, (B, C, H, W), dtype=jnp.float32)
    segmentation_map = jax.random.uniform(ks, (B, L, Hs, Ws), dtype=jnp.float32)

    # ClassAffine params: weight ~ U(0,1) (nn.init.uniform_), bias zeros
    weight = jax.random.uniform(kw, (L, C), dtype=jnp.float32)
    bias = jnp.zeros((L, C), dtype=jnp.float32)

    out = clade_modulation(x, segmentation_map, weight, bias)
    out = jax.block_until_ready(out)

    ref = clade_modulation_ref(x, segmentation_map, weight, bias)
    assert out.shape == (B, C, H, W)
    assert jnp.allclose(out, ref, atol=1e-4, rtol=1e-4), "mismatch vs reference"

    print("KERNEL_OK")
</pallas_src>

<mosaic_0001>
module attributes {stable_mosaic.version = 11 : i64} {
  func.func @_stats_kernel(%arg0: i32, %arg1: i32, %arg2: i32, %arg3: memref<1x32x256xf32, #tpu.memory_space<vmem>>, %arg4: memref<1x2x32x128xf32, #tpu.memory_space<vmem>>) attributes {dimension_semantics = [#tpu.dimension_semantics<parallel>, #tpu.dimension_semantics<parallel>, #tpu.dimension_semantics<arbitrary>], iteration_bounds = array<i64: 1, 2, 1>, scalar_prefetch = 0 : i64, scratch_operands = 0 : i64, tpu.core_type = #tpu.core_type<tc>, window_params = [{transform_indices = @transform_0, window_bounds = array<i64: 1, 32, 256>}, {transform_indices = @transform_1, window_bounds = array<i64: 1, 2, 32, 128>}]} {
    %c0_i32 = arith.constant 0 : i32
    %0 = arith.cmpi eq, %arg2, %c0_i32 : i32
    %1 = arith.extui %0 : i1 to i32
    %c0_i32_0 = arith.constant 0 : i32
    %2 = arith.cmpi ne, %1, %c0_i32_0 : i32
    scf.if %2 {
      %cst_19 = arith.constant 0.000000e+00 : f32
      %36 = vector.broadcast %cst_19 : f32 to vector<1x2x32x128xf32>
      %c0_20 = arith.constant 0 : index
      %c0_21 = arith.constant 0 : index
      %c0_22 = arith.constant 0 : index
      %c0_23 = arith.constant 0 : index
      %37 = vector.load %arg4[%c0_20, %c0_21, %c0_22, %c0_23] : memref<1x2x32x128xf32, #tpu.memory_space<vmem>>, vector<1x2x32x128xf32>
      tpu.vector_store %arg4[%c0_20, %c0_21, %c0_22, %c0_23], %36 {strides = array<i32>} : memref<1x2x32x128xf32, #tpu.memory_space<vmem>>, vector<1x2x32x128xf32>,
    } else {
    }
    %c1_i32 = arith.constant 1 : i32
    %3 = arith.muli %arg0, %c1_i32 : i32
    %4 = arith.addi %3, %arg2 : i32
    %5 = tpu.iota {dimensions = array<i32: 1>} : vector<1x256xi32>
    %c256_i32 = arith.constant 256 : i32
    %6 = arith.muli %4, %c256_i32 : i32
    %7 = vector.broadcast %6 : i32 to vector<1x256xi32>
    %8 = arith.addi %7, %5 : vector<1x256xi32>
    %c256_i32_1 = arith.constant 256 : i32
    %9 = vector.broadcast %c256_i32_1 : i32 to vector<1x256xi32>
    %10 = arith.cmpi slt, %8, %9 : vector<1x256xi32>
    %c0 = arith.constant 0 : index
    %c0_2 = arith.constant 0 : index
    %c0_3 = arith.constant 0 : index
    %11 = vector.load %arg3[%c0, %c0_2, %c0_3] : memref<1x32x256xf32, #tpu.memory_space<vmem>>, vector<1x32x256xf32>
    %12 = vector.shape_cast %11 : vector<1x32x256xf32> to vector<32x256xf32>
    %cst = arith.constant 0.000000e+00 : f32
    %13 = vector.shape_cast %10 : vector<1x256xi1> to vector<1x256xi1>
    %14 = vector.broadcast %13 : vector<1x256xi1> to vector<32x256xi1>
    %15 = vector.broadcast %cst : f32 to vector<32x256xf32>
    %16 = arith.select %14, %12, %15 : vector<32x256xi1>, vector<32x256xf32>
    %17 = arith.mulf %16, %16 : vector<32x256xf32>
    %18 = vector.extract_strided_slice %16 {offsets = [0, 0], sizes = [32, 128], strides = [1, 1]} : vector<32x256xf32> to vector<32x128xf32>
    %19 = vector.extract_strided_slice %16 {offsets = [0, 128], sizes = [32, 128], strides = [1, 1]} : vector<32x256xf32> to vector<32x128xf32>
    %20 = arith.addf %18, %19 : vector<32x128xf32>
    %21 = vector.extract_strided_slice %17 {offsets = [0, 0], sizes = [32, 128], strides = [1, 1]} : vector<32x256xf32> to vector<32x128xf32>
    %22 = vector.extract_strided_slice %17 {offsets = [0, 128], sizes = [32, 128], strides = [1, 1]} : vector<32x256xf32> to vector<32x128xf32>
    %23 = arith.addf %21, %22 : vector<32x128xf32>
    %c0_4 = arith.constant 0 : index
    %c0_5 = arith.constant 0 : index
    %c0_6 = arith.constant 0 : index
    %c0_7 = arith.constant 0 : index
    %24 = vector.load %arg4[%c0_4, %c0_5, %c0_6, %c0_7] : memref<1x2x32x128xf32, #tpu.memory_space<vmem>>, vector<1x1x32x128xf32>
    %25 = vector.shape_cast %24 : vector<1x1x32x128xf32> to vector<32x128xf32>
    %26 = arith.addf %25, %20 : vector<32x128xf32>
    %c0_8 = arith.constant 0 : index
    %c0_9 = arith.constant 0 : index
    %c0_10 = arith.constant 0 : index
    %c0_11 = arith.constant 0 : index
    %27 = vector.load %arg4[%c0_8, %c0_9, %c0_10, %c0_11] : memref<1x2x32x128xf32, #tpu.memory_space<vmem>>, vector<1x1x32x128xf32>
    %28 = vector.shape_cast %27 : vector<1x1x32x128xf32> to vector<32x128xf32>
    %29 = vector.shape_cast %26 : vector<32x128xf32> to vector<1x1x32x128xf32>
    tpu.vector_store %arg4[%c0_8, %c0_9, %c0_10, %c0_11], %29 {strides = array<i32>} : memref<1x2x32x128xf32, #tpu.memory_space<vmem>>, vector<1x1x32x128xf32>,
    %c0_12 = arith.constant 0 : index
    %c1 = arith.constant 1 : index
    %c0_13 = arith.constant 0 : index
    %c0_14 = arith.constant 0 : index
    %30 = vector.load %arg4[%c0_12, %c1, %c0_13, %c0_14] : memref<1x2x32x128xf32, #tpu.memory_space<vmem>>, vector<1x1x32x128xf32>
    %31 = vector.shape_cast %30 : vector<1x1x32x128xf32> to vector<32x128xf32>
    %32 = arith.addf %31, %23 : vector<32x128xf32>
    %c0_15 = arith.constant 0 : index
    %c1_16 = arith.constant 1 : index
    %c0_17 = arith.constant 0 : index
    %c0_18 = arith.constant 0 : index
    %33 = vector.load %arg4[%c0_15, %c1_16, %c0_17, %c0_18] : memref<1x2x32x128xf32, #tpu.memory_space<vmem>>, vector<1x1x32x128xf32>
    %34 = vector.shape_cast %33 : vector<1x1x32x128xf32> to vector<32x128xf32>
    %35 = vector.shape_cast %32 : vector<32x128xf32> to vector<1x1x32x128xf32>
    tpu.vector_store %arg4[%c0_15, %c1_16, %c0_17, %c0_18], %35 {strides = array<i32>} : memref<1x2x32x128xf32, #tpu.memory_space<vmem>>, vector<1x1x32x128xf32>,
    return
  }
  func.func @transform_0(%arg0: i32, %arg1: i32, %arg2: i32) -> (i32, i32, i32) {
    %c0_i32 = arith.constant 0 : i32
    %c0_i32_0 = arith.constant 0 : i32
    return %arg1, %c0_i32, %arg2 : i32, i32, i32
  }
  func.func @transform_1(%arg0: i32, %arg1: i32, %arg2: i32) -> (i32, i32, i32, i32) {
    %c2_i32 = arith.constant 2 : i32
    %0 = arith.muli %arg0, %c2_i32 : i32
    %1 = arith.addi %0, %arg1 : i32
    %c0_i32 = arith.constant 0 : i32
    %c0_i32_0 = arith.constant 0 : i32
    %c0_i32_1 = arith.constant 0 : i32
    %c0_i32_2 = arith.constant 0 : i32
    return %1, %c0_i32, %c0_i32_0, %c0_i32_1 : i32, i32, i32, i32
  }
}

</mosaic_0001>

<llo_original>
// kernel: tpu_custom_call.1
$region0: #{tpu_custom_call.1}
  #allocation0 [shape = 'u32[]', space=smem, size = 0x4, offset = 0x4, fixed_abs, tag = 'smem constant byte address 0x4 - core index']
  #allocation1 [shape = 'u32[72,128]{1,0:T(1,128)}', space=vmem, size = 0x9000, scoped, tag = 'internal scratch']
  %s0 = inlined_call_operand.hbm [shape: f32[2,32,256], index: 0, kind: input, shape index: {}]
  %s1 = inlined_call_operand.hbm [shape: f32[2,2,32,128], index: 1, kind: output, shape index: {}]
  %s2 = sld [smem:[#allocation0]]
  $region45: #{tpu_custom_call.1} parent=0
    _
  %s4 = ssub.s32 1, %s2
  %s5 = scalar_select 0, %s4, %s2
  $region1: #{tpu_custom_call.1} parent=0
    #allocation2 [shape = 'u8[65536]{0}', space=vmem, size = 0x10000, scoped, tag = 'input window, operand 0']
    #allocation3 [shape = 's32[2]{0}', space=sflag, size = 0x8, scoped, tag = 'scoped memory for tpu_custom_call.1']
    #allocation4 [shape = 's32[2]{0}', space=sflag, size = 0x8, scoped, tag = 'scoped memory for tpu_custom_call.1']
    #allocation5 [shape = 'u8[65536]{0}', space=vmem, size = 0x10000, scoped, tag = 'output window, operand 0']
    %6 = vsyncpa [#allocation3], 0
    %s7 = scalar_lea.sflag [#allocation3], 1
    %8 = vsyncpa %s7, 0
    %9 = vsyncpa [#allocation4], 0
    %s10 = scalar_lea.sflag [#allocation4], 1
    %11 = vsyncpa %s10, 0
    loop: start=0, step=1, limit=4
    $region2: #{tpu_custom_call.1} parent=1 // loop_pre_header
      _
    $region3: #{tpu_custom_call.1} parent=1 // loop_header
      %s13 = sphi 0, %s17
      %p14 = scmp.ge.s32.totalorder %s13, 4
      %s20 = sphi 0, %s39
      %s21 = sphi 0, %s35
      %s22 = sphi 0, %s31
      %s23 = sphi 0, %s20
      %s24 = sphi 0, %s21
      %s25 = sphi 0, %s22
      %s26 = sphi 0, %s23
      %s27 = sphi 0, %s24
      %s28 = sphi 0, %s25
      %s44 = sphi 0, %s46
      %s47 = sphi 0, %s44
      %s48 = sphi 0, %s47
      %s64 = sphi 0, %s48
      %s74 = sphi 0, %s76
      %s77 = sphi 0, %s74
      %s78 = sphi 0, %s77
      %s94 = sphi 0, %s78
    $region4: #{tpu_custom_call.1} parent=1 // loop_header_branch
      %16 = sbr.rel (%p14) target = $region8
    $region5: #{tpu_custom_call.1} parent=1 // loop_body
      %s18 = ssub.s32 %s13, 1
      %s19 = ssub.s32 %s13, 2
      %s29 = sadd.s32 1, %s22
      %p30 = scmp.ge.s32.totalorder %s29, 1
      %s31 = scalar_select %p30, 0, %s29
      %s32 = sadd.s32 1, %s21
      %s33 = scalar_select %p30, %s32, %s21
      %p34 = scmp.ge.s32.totalorder %s33, 2
      %s35 = scalar_select %p34, 0, %s33
      %s36 = sadd.s32 1, %s20
      %s37 = scalar_select %p34, %s36, %s20
      %p38 = scmp.ge.s32.totalorder %s37, 1
      %s39 = scalar_select %p38, 0, %s37
      %s40 = ssub.s32 %s21, %s35
      %s41 = ssub.s32 %s22, %s31
      %s42 = sor.u32 %s40, %s41
      %p43 = scmp.eq.s32.totalorder %s42, 0
      %s45 = sadd.s32 %s44, 1
      %s46 = scalar_select %p43, %s44, %s45
      %p49 = pneg %p43
      %p50 = scmp.eq.s32.totalorder %s13, 1
      %p51 = por %p49, %p50
      %p52 = scmp.ne.s32.totalorder %s44, %s47
      %p53 = scmp.eq.s32.totalorder %s13, 0
      %p54 = por %p52, %p53
      %p55 = scmp.ne.s32.totalorder %s44, %s47
      %p56 = scmp.eq.s32.totalorder %s18, 1
      %p57 = por %p55, %p56
      %p58 = scmp.ne.s32.totalorder %s47, %s48
      %p59 = scmp.eq.s32.totalorder %s18, 0
      %p60 = por %p58, %p59
      %p61 = scmp.ne.s32.totalorder %s47, %s48
      %p62 = scmp.eq.s32.totalorder %s19, 1
      %p63 = por %p61, %p62
      %p65 = scmp.ne.s32.totalorder %s48, %s64
      %p66 = scmp.eq.s32.totalorder %s19, 0
      %p67 = por %p65, %p66
      %s68 = smul.u32 %s20, 2
      %s69 = sadd.s32 %s68, %s21
      %s70 = smul.u32 %s39, 2
      %s71 = sadd.s32 %s70, %s35
      %s72 = ssub.s32 %s69, %s71
      %p73 = scmp.eq.s32.totalorder %s72, 0
      %s75 = sadd.s32 %s74, 1
      %s76 = scalar_select %p73, %s74, %s75
      %p79 = pneg %p73
      %p80 = scmp.eq.s32.totalorder %s13, 1
      %p81 = por %p79, %p80
      %p82 = scmp.ne.s32.totalorder %s74, %s77
      %p83 = scmp.eq.s32.totalorder %s13, 0
      %p84 = por %p82, %p83
      %p85 = scmp.ne.s32.totalorder %s74, %s77
      %p86 = scmp.eq.s32.totalorder %s18, 1
      %p87 = por %p85, %p86
      %p88 = scmp.ne.s32.totalorder %s77, %s78
      %p89 = scmp.eq.s32.totalorder %s18, 0
      %p90 = por %p88, %p89
      %p91 = scmp.ne.s32.totalorder %s77, %s78
      %p92 = scmp.eq.s32.totalorder %s19, 1
      %p93 = por %p91, %p92
      %p95 = scmp.ne.s32.totalorder %s78, %s94
      %p96 = scmp.eq.s32.totalorder %s19, 0
      %p97 = por %p95, %p96
      %p98 = scmp.le.s32.totalorder 1, %s13
      %p99 = scmp.lt.s32.totalorder %s13, 3
      %p100 = pnand %p98, %p99
      %p101 = pneg %p100
      // Predicated region
      $region9: #{tpu_custom_call.1} parent=5 // pred_check
        _
      $region10: #{tpu_custom_call.1} parent=5 // pred_check_branch
        %103 = sbr.rel (%p100) target = $region12
      $region11: #{tpu_custom_call.1} parent=5 // pred_region
        %s104 = ssub.s32 %s13, 1
      $region12: #{tpu_custom_call.1} parent=5 // pred_fallthru
        _
      %p105 = scmp.lt.s32.totalorder %s13, 2
      // Predicated region
      $region13: #{tpu_custom_call.1} parent=5 // pred_check
        %p106 = pneg %p105
      $region14: #{tpu_custom_call.1} parent=5 // pred_check_branch
        %108 = sbr.rel (%p106) target = $region16
      $region15: #{tpu_custom_call.1} parent=5 // pred_region
        // Predicated region
        $region17: #{tpu_custom_call.1} parent=15 // pred_check
          %p109 = pneg %p54
        $region18: #{tpu_custom_call.1} parent=15 // pred_check_branch
          %111 = sbr.rel (%p109) target = $region20
        $region19: #{tpu_custom_call.1} parent=15 // pred_region
          %s112 = sand.u32 %s44, 1
          %s113 = scalar_lea.sflag [#allocation3], %s112
          %s114 = sand.u32 %s44, 1
          %s115 = smul.addr %s114, 64
          %s116 = scalar_lea.vmem [#allocation2], %s115
          %s117 = smul.u32 2, %s22
          %119 = vsyncadd %s113, 0
          %s120 = smul.addr %s21, 8
          %s121 = sadd.s32 %s117, %s120
          %s122 = smul.addr %s121, 8
          %s123 = scalar_lea.hbm %s0, %s122
          %s124 = sshll.u32 %s123, 4
          %s125 = int_to_ptr.hbm [resolvable:$true] %s124
          %s126 = sshll.u32 %s116, 4
          %s127 = int_to_ptr.vmem [resolvable:$true] %s126
          %132 = dma.hbm_to_vmem [thread:$0]  %s125, 1024, %s127, %s113, 256, 256, 16
        $region20: #{tpu_custom_call.1} parent=15 // pred_fallthru
          _
      $region16: #{tpu_custom_call.1} parent=5 // pred_fallthru
        _
      %p133 = scmp.le.s32.totalorder 1, %s13
      %p134 = scmp.lt.s32.totalorder %s13, 3
      %p135 = pnand %p133, %p134
      %p136 = pneg %p135
      // Predicated region
      $region21: #{tpu_custom_call.1} parent=5 // pred_check
        _
      $region22: #{tpu_custom_call.1} parent=5 // pred_check_branch
        %138 = sbr.rel (%p135) target = $region24
      $region23: #{tpu_custom_call.1} parent=5 // pred_region
        %s139 = ssub.s32 %s13, 1
        %s140 = sand.u32 %s47, 1
        %s141 = scalar_lea.sflag [#allocation3], %s140
        %s142 = sand.u32 %s47, 1
        %s143 = smul.addr %s142, 64
        %s144 = scalar_lea.vmem [#allocation2], %s143
        // Predicated region
        $region25: #{tpu_custom_call.1} parent=23 // pred_check
          %p145 = pneg %p60
        $region26: #{tpu_custom_call.1} parent=23 // pred_check_branch
          %147 = sbr.rel (%p145) target = $region28
        $region27: #{tpu_custom_call.1} parent=23 // pred_region
          %149 = dma.done %s141, 1024
        $region28: #{tpu_custom_call.1} parent=23 // pred_fallthru
          _
        %s150 = sand.u32 %s47, 1
        %s151 = scalar_lea.sflag [#allocation3], %s150
        %s152 = sand.u32 %s47, 1
        %s153 = smul.addr %s152, 64
        %s154 = scalar_lea.vmem [#allocation2], %s153
        %p155 = pneg %p60
        %p156 = pneg %p57
        %p157 = pneg %p90
        %p158 = pneg %p87
        %s159 = sand.u32 %s77, 1
        %s160 = scalar_lea.sflag [#allocation4], %s159
        %s161 = sand.u32 %s77, 1
        %s162 = smul.addr %s161, 64
        %s163 = scalar_lea.vmem [#allocation5], %s162
        %s164 = smul.u32 2, %s25
        %s165 = smul.u32 %s23, 2
        %s166 = sadd.s32 %s165, %s24
        %p167 = scmp.eq.s32.totalorder %s25, 0
        // Predicated region
        $region29: #{tpu_custom_call.1} parent=23 // pred_check
          %p168 = pneg %p167
        $region30: #{tpu_custom_call.1} parent=23 // pred_check_branch
          %170 = sbr.rel (%p168) target = $region32
        $region31: #{tpu_custom_call.1} parent=23 // pred_region
          %171 = vst [vmem:[%s163] sm:$0xff] 0.0
          %172 = vst [vmem:[%s163 + $0x8] sm:$0xff] 0.0
          %173 = vst [vmem:[%s163 + $0x10] sm:$0xff] 0.0
          %174 = vst [vmem:[%s163 + $0x18] sm:$0xff] 0.0
          %175 = vst [vmem:[%s163 + $0x20] sm:$0xff] 0.0
          %176 = vst [vmem:[%s163 + $0x28] sm:$0xff] 0.0
          %177 = vst [vmem:[%s163 + $0x30] sm:$0xff] 0.0
          %178 = vst [vmem:[%s163 + $0x38] sm:$0xff] 0.0
        $region32: #{tpu_custom_call.1} parent=23 // pred_fallthru
          _
        %s179 = sadd.s32 %s23, %s25
        %v180 = vlaneseq
        %v181 = vand.u32 %v180, 127
        %v182 = vadd.s32 %v181, 128
        %s183 = smul.u32 %s179, 256
        %v184 = vstv %s183
        %v185 = vadd.s32 %v184, %v181
        %v186 = vadd.s32 %v184, %v182
        %vm187 = vcmp.lt.s32.totalorder %v185, 256
        %vm188 = vcmp.lt.s32.totalorder %v186, 256
        %v189 = vld [vmem:[%s144] sm:$0xff]
        %v190 = vld [vmem:[%s144 + $0x8] sm:$0xff]
        %v191 = vld [vmem:[%s144 + $0x10] sm:$0xff]
        %v192 = vld [vmem:[%s144 + $0x18] sm:$0xff]
        %v193 = vld [vmem:[%s144 + $0x20] sm:$0xff]
        %v194 = vld [vmem:[%s144 + $0x28] sm:$0xff]
        %v195 = vld [vmem:[%s144 + $0x30] sm:$0xff]
        %v196 = vld [vmem:[%s144 + $0x38] sm:$0xff]
        %v197 = vsel %vm187, 1, 0
        %v198 = vsel %vm188, 1, 0
        %vm199 = vcmp.eq.s32.totalorder %v197, 1
        %vm200 = vcmp.eq.s32.totalorder %v198, 1
        %v201 = vsel %vm199, %v189, 0.0
        %v202 = vsel %vm200, %v190, 0.0
        %v203 = vsel %vm199, %v191, 0.0
        %v204 = vsel %vm200, %v192, 0.0
        %v205 = vsel %vm199, %v193, 0.0
        %v206 = vsel %vm200, %v194, 0.0
        %v207 = vsel %vm199, %v195, 0.0
        %v208 = vsel %vm200, %v196, 0.0
        %v209 = vmul.f32 %v201, %v201
        %v210 = vmul.f32 %v202, %v202
        %v211 = vmul.f32 %v203, %v203
        %v212 = vmul.f32 %v204, %v204
        %v213 = vmul.f32 %v205, %v205
        %v214 = vmul.f32 %v206, %v206
        %v215 = vmul.f32 %v207, %v207
        %v216 = vmul.f32 %v208, %v208
        %v217 = vadd.f32 %v201, %v202
        %v218 = vadd.f32 %v203, %v204
        %v219 = vadd.f32 %v205, %v206
        %v220 = vadd.f32 %v207, %v208
        %v221 = vadd.f32 %v209, %v210
        %v222 = vadd.f32 %v211, %v212
        %v223 = vadd.f32 %v213, %v214
        %v224 = vadd.f32 %v215, %v216
        %v225 = vld [vmem:[%s163] sm:$0xff]
        %v226 = vld [vmem:[%s163 + $0x8] sm:$0xff]
        %v227 = vld [vmem:[%s163 + $0x10] sm:$0xff]
        %v228 = vld [vmem:[%s163 + $0x18] sm:$0xff]
        %v229 = vadd.f32 %v225, %v217
        %v230 = vadd.f32 %v226, %v218
        %v231 = vadd.f32 %v227, %v219
        %v232 = vadd.f32 %v228, %v220
        %233 = vst [vmem:[%s163] sm:$0xff] %v229
        %234 = vst [vmem:[%s163 + $0x8] sm:$0xff] %v230
        %235 = vst [vmem:[%s163 + $0x10] sm:$0xff] %v231
        %236 = vst [vmem:[%s163 + $0x18] sm:$0xff] %v232
        %s237 = scalar_lea.vmem %s163, 32 [#allocation5]
        %v238 = vld [vmem:[%s237] sm:$0xff]
        %v239 = vld [vmem:[%s237 + $0x8] sm:$0xff]
        %v240 = vld [vmem:[%s237 + $0x10] sm:$0xff]
        %v241 = vld [vmem:[%s237 + $0x18] sm:$0xff]
        %v242 = vadd.f32 %v238, %v221
        %v243 = vadd.f32 %v239, %v222
        %v244 = vadd.f32 %v240, %v223
        %v245 = vadd.f32 %v241, %v224
        %246 = vst [vmem:[%s237] sm:$0xff] %v242
        %247 = vst [vmem:[%s237 + $0x8] sm:$0xff] %v243
        %248 = vst [vmem:[%s237 + $0x10] sm:$0xff] %v244
        %249 = vst [vmem:[%s237 + $0x18] sm:$0xff] %v245
        %s250 = sand.u32 %s77, 1
        %s251 = scalar_lea.sflag [#allocation4], %s250
        %s252 = sand.u32 %s77, 1
        %s253 = smul.addr %s252, 64
        %s254 = scalar_lea.vmem [#allocation5], %s253
        // Predicated region
        $region33: #{tpu_custom_call.1} parent=23 // pred_check
          %p255 = pneg %p87
        $region34: #{tpu_custom_call.1} parent=23 // pred_check_branch
          %257 = sbr.rel (%p255) target = $region36
        $region35: #{tpu_custom_call.1} parent=23 // pred_region
          %s258 = smul.u32 %s23, 2
          %s259 = sadd.s32 %s258, %s24
          %261 = vsyncadd %s251, 0
          %s262 = smul.addr %s259, 8
          %s263 = smul.addr %s262, 8
          %s264 = scalar_lea.hbm %s1, %s263
          %s265 = sshll.u32 %s254, 4
          %s266 = int_to_ptr.vmem [resolvable:$true] %s265
          %s267 = sshll.u32 %s264, 4
          %s268 = int_to_ptr.hbm [resolvable:$true] %s267
          %273 = dma.vmem_to_hbm [thread:$0]  %s266, 1024, %s268, %s251, 128, 128, 8
        $region36: #{tpu_custom_call.1} parent=23 // pred_fallthru
          _
      $region24: #{tpu_custom_call.1} parent=5 // pred_fallthru
        _
      %p274 = scmp.le.s32.totalorder 2, %s13
      // Predicated region
      $region37: #{tpu_custom_call.1} parent=5 // pred_check
        %p275 = pneg %p274
      $region38: #{tpu_custom_call.1} parent=5 // pred_check_branch
        %277 = sbr.rel (%p275) target = $region40
      $region39: #{tpu_custom_call.1} parent=5 // pred_region
        %s278 = ssub.s32 %s13, 2
        // Predicated region
        $region41: #{tpu_custom_call.1} parent=39 // pred_check
          %p279 = pneg %p93
        $region42: #{tpu_custom_call.1} parent=39 // pred_check_branch
          %281 = sbr.rel (%p279) target = $region44
        $region43: #{tpu_custom_call.1} parent=39 // pred_region
          %s282 = sand.u32 %s78, 1
          %s283 = scalar_lea.sflag [#allocation4], %s282
          %s284 = sand.u32 %s78, 1
          %s285 = smul.addr %s284, 64
          %s286 = scalar_lea.vmem [#allocation5], %s285
          %288 = dma.done %s283, 1024
        $region44: #{tpu_custom_call.1} parent=39 // pred_fallthru
          _
      $region40: #{tpu_custom_call.1} parent=5 // pred_fallthru
        _
    $region6: #{tpu_custom_call.1} parent=1 // loop_footer
      %s17 = sadd.s32 1, %s13
    $region7: #{tpu_custom_call.1} parent=1 // loop_footer_branch
      %12 = sbr.rel target = $region3
    $region8: #{tpu_custom_call.1} parent=1 // loop_exit
      _
    %289 = vsyncpa [#allocation3], 1
    %s290 = scalar_lea.sflag [#allocation3], 1
    %291 = vsyncpa %s290, 1
    %292 = vsyncpa [#allocation4], 1
    %s293 = scalar_lea.sflag [#allocation4], 1
    %294 = vsyncpa %s293, 1

</llo_original>
